<compile_context>
chip_gen: v6e
topology: v6e:2x2x1
jax: 0.10.0
libtpu: 0.0.40
codegen_flags: <defaults>
</compile_context>

<pallas_src>
import jax
import jax.numpy as jnp
import numpy as np
from jax import lax
from jax.experimental import pallas as pl
from jax.experimental.pallas import tpu as pltpu


# ---------------------------------------------------------------------------
# Helpers
# ---------------------------------------------------------------------------
def _pick_tile(n_pad):
    """Largest lane-aligned tile dividing the (128-padded) problem size."""
    candidates = [512, 256, 128]
    try:
        # v7x: ~2.3x HBM bandwidth, same ~0.35us per-grid-step overhead, so
        # bigger tiles amortize better.  Guarded: falls back silently elsewhere.
        ver = str(getattr(pltpu.get_tpu_info(), "chip_version", ""))
        if "7" in ver:
            candidates = [1024] + candidates
    except Exception:
        pass
    for t in candidates:
        if n_pad % t == 0:
            return t
    return 128  # unreachable: n_pad is always a multiple of 128


def _mosaic_params(dim_sems, t):
    # 32 MiB scoped VMEM (v6e/v7x default; safe headroom on v5e's 128 MiB
    # physical); 48 MiB when running 1024-wide tiles (v7x preference).
    vmem = (48 << 20) if t >= 1024 else (32 << 20)
    return pltpu.CompilerParams(dimension_semantics=dim_sems,
                                vmem_limit_bytes=vmem)


# ---------------------------------------------------------------------------
# forward(): identity read of the parameter — no kernel (saves HBM traffic).
# ---------------------------------------------------------------------------
def estimate_adj_forward(estimated_adj):
    return estimated_adj


# ---------------------------------------------------------------------------
# Pass 1 (symmetric=False): r_inv = guarded rsqrt(rowsum(A) + 1).
# The (T,1) output block is resident across the inner "arbitrary" j axis and
# doubles as the accumulator; the rsqrt epilogue is fused at the last j.
# ---------------------------------------------------------------------------
def _rowsum_rinv_kernel(a_ref, rinv_ref):
    j = pl.program_id(1)

    @pl.when(j == 0)
    def _():
        rinv_ref[...] = jnp.zeros_like(rinv_ref)

    a = a_ref[...].astype(jnp.float32)
    rinv_ref[...] += jnp.sum(a, axis=1, keepdims=True)

    @pl.when(j == pl.num_programs(1) - 1)
    def _():
        r = lax.rsqrt(rinv_ref[...] + 1.0)          # +1.0 = rowsum of I
        rinv_ref[...] = jnp.where(jnp.isinf(r), 0.0, r)


def _rowsum_rinv_pass(adj, t):
    n = adj.shape[0]
    nt = n // t
    return pl.pallas_call(
        _rowsum_rinv_kernel,
        out_shape=jax.ShapeDtypeStruct((n, 1), jnp.float32),
        grid=(nt, nt),
        in_specs=[pl.BlockSpec((t, t), lambda i, j: (i, j))],
        out_specs=pl.BlockSpec((t, 1), lambda i, j: (i, 0)),
        compiler_params=_mosaic_params(("parallel", "arbitrary"), t),
    )(adj)


# ---------------------------------------------------------------------------
# Pass 1 (symmetric=True): single read of A.  Each tile contributes its
# row-sums to a resident (T,1) accumulator and its column-sums to a (1,N)
# accumulator that stays resident for the whole grid (constant index map).
# rowsum(sym(A)) = (rowsum(A) + colsum(A)) / 2 is combined in the wrapper.
# ---------------------------------------------------------------------------
def _sym_sums_kernel(a_ref, rowacc_ref, colacc_ref):
    i = pl.program_id(0)
    j = pl.program_id(1)
    t = a_ref.shape[1]

    @pl.when(j == 0)
    def _():
        rowacc_ref[...] = jnp.zeros_like(rowacc_ref)

    @pl.when(jnp.logical_and(i == 0, j == 0))
    def _():
        colacc_ref[...] = jnp.zeros_like(colacc_ref)

    a = a_ref[...].astype(jnp.float32)
    rowacc_ref[...] += jnp.sum(a, axis=1, keepdims=True)
    off = pl.multiple_of(j * t, t)
    colacc_ref[:, pl.ds(off, t)] += jnp.sum(a, axis=0, keepdims=True)


def _sym_sums_pass(adj, t):
    n = adj.shape[0]
    nt = n // t
    return pl.pallas_call(
        _sym_sums_kernel,
        out_shape=(jax.ShapeDtypeStruct((n, 1), jnp.float32),
                   jax.ShapeDtypeStruct((1, n), jnp.float32)),
        grid=(nt, nt),
        in_specs=[pl.BlockSpec((t, t), lambda i, j: (i, j))],
        out_specs=(pl.BlockSpec((t, 1), lambda i, j: (i, 0)),
                   pl.BlockSpec((1, n), lambda i, j: (0, 0))),
        # The column accumulator spans the whole grid -> fully sequential
        # (HBM-bound anyway; megacore would not help here).
        compiler_params=_mosaic_params(("arbitrary", "arbitrary"), t),
    )(adj)


# ---------------------------------------------------------------------------
# Pass 2 (symmetric=False): out[i,j] = r[i] * A[i,j] * r[j]
# (+ r[i]*r[j] on the global diagonal, diagonal tiles only — no eye matrix).
# ---------------------------------------------------------------------------
def _scale_kernel(a_ref, rr_ref, rc_ref, o_ref):
    a = a_ref[...].astype(jnp.float32)
    r_row = rr_ref[...]                     # (T, 1) f32
    r_col = rc_ref[...]                     # (1, T) f32
    scaled = a * r_row * r_col
    is_diag = pl.program_id(0) == pl.program_id(1)

    @pl.when(is_diag)
    def _():
        rows = lax.broadcasted_iota(jnp.int32, scaled.shape, 0)
        cols = lax.broadcasted_iota(jnp.int32, scaled.shape, 1)
        o_ref[...] = jnp.where(rows == cols, scaled + r_row * r_col,
                               scaled).astype(o_ref.dtype)

    @pl.when(jnp.logical_not(is_diag))
    def _():
        o_ref[...] = scaled.astype(o_ref.dtype)


def _scale_pass(adj, r_row, r_col, t, out_dtype):
    n = adj.shape[0]
    nt = n // t
    return pl.pallas_call(
        _scale_kernel,
        out_shape=jax.ShapeDtypeStruct((n, n), out_dtype),
        grid=(nt, nt),
        in_specs=[pl.BlockSpec((t, t), lambda i, j: (i, j)),
                  pl.BlockSpec((t, 1), lambda i, j: (i, 0)),
                  pl.BlockSpec((1, t), lambda i, j: (0, j))],
        out_specs=pl.BlockSpec((t, t), lambda i, j: (i, j)),
        compiler_params=_mosaic_params(("parallel", "parallel"), t),
    )(adj, r_row, r_col)


# ---------------------------------------------------------------------------
# Pass 2 (symmetric=True): upper-triangular schedule via scalar prefetch.
#   direct step (oi == ii): sym = (A[i,j] + A[j,i]^T)/2, scale, write out[i,j],
#       stash the scaled block in VMEM scratch.
#   mirror step (oi != ii), always immediately after its direct step: write
#       out[j,i] = stash^T.  Its input block indices are unchanged, so the
#       pipeline elides their DMA -> each A tile is read ~once.
# ---------------------------------------------------------------------------
def _sym_scale_kernel(ii_ref, jj_ref, oi_ref, oj_ref,
                      a_ref, at_ref, rr_ref, rc_ref, o_ref, save_ref):
    s = pl.program_id(0)
    ii = ii_ref[s]
    jj = jj_ref[s]
    is_mirror = oi_ref[s] != ii

    @pl.when(jnp.logical_not(is_mirror))
    def _():
        a = a_ref[...].astype(jnp.float32)
        at = at_ref[...].astype(jnp.float32)
        sym = (a + at.T) * 0.5
        r_row = rr_ref[...]                 # (T, 1) f32
        r_col = rc_ref[...]                 # (1, T) f32
        scaled = sym * r_row * r_col
        save_ref[...] = scaled
        rows = lax.broadcasted_iota(jnp.int32, scaled.shape, 0)
        cols = lax.broadcasted_iota(jnp.int32, scaled.shape, 1)
        eye_gain = jnp.where(ii == jj, 1.0, 0.0)      # identity only on diag tiles
        diag_term = jnp.where(rows == cols, r_row * r_col, 0.0) * eye_gain
        o_ref[...] = (scaled + diag_term).astype(o_ref.dtype)

    @pl.when(is_mirror)
    def _():
        o_ref[...] = save_ref[...].T.astype(o_ref.dtype)


def _sym_scale_pass(adj, r_row, r_col, t, out_dtype):
    n = adj.shape[0]
    nt = n // t
    # Schedule: direct step for every unordered block pair (i <= j); a mirror
    # step right after it for i < j.  len(schedule) == nt*nt steps total.
    ii, jj, oi, oj = [], [], [], []
    for i in range(nt):
        for j in range(i, nt):
            ii.append(i); jj.append(j); oi.append(i); oj.append(j)
            if j != i:
                ii.append(i); jj.append(j); oi.append(j); oj.append(i)
    steps = len(ii)
    ii = jnp.asarray(ii, jnp.int32)
    jj = jnp.asarray(jj, jnp.int32)
    oi = jnp.asarray(oi, jnp.int32)
    oj = jnp.asarray(oj, jnp.int32)

    grid_spec = pltpu.PrefetchScalarGridSpec(
        num_scalar_prefetch=4,
        grid=(steps,),
        in_specs=[
            pl.BlockSpec((t, t), lambda s, ii, jj, oi, oj: (ii[s], jj[s])),
            pl.BlockSpec((t, t), lambda s, ii, jj, oi, oj: (jj[s], ii[s])),
            pl.BlockSpec((t, 1), lambda s, ii, jj, oi, oj: (ii[s], 0)),
            pl.BlockSpec((1, t), lambda s, ii, jj, oi, oj: (0, jj[s])),
        ],
        out_specs=pl.BlockSpec((t, t), lambda s, ii, jj, oi, oj: (oi[s], oj[s])),
        scratch_shapes=[pltpu.VMEM((t, t), jnp.float32)],
    )
    return pl.pallas_call(
        _sym_scale_kernel,
        out_shape=jax.ShapeDtypeStruct((n, n), out_dtype),
        grid_spec=grid_spec,
        # Mirror steps consume scratch written by the preceding step: the 1-D
        # grid must stay sequential ("arbitrary").
        compiler_params=_mosaic_params(("arbitrary",), t),
    )(ii, jj, oi, oj, adj, adj, r_row, r_col)


# ---------------------------------------------------------------------------
# normalize() wrapper
# ---------------------------------------------------------------------------
def estimate_adj_normalize(estimated_adj, symmetric=False, tile=None):
    """D^{-1/2} (sym(A) + I) D^{-1/2} of the estimated adjacency parameter."""
    n = estimated_adj.shape[0]
    n_pad = ((n + 127) // 128) * 128
    adj = estimated_adj
    if n_pad != n:
        # Zero padding is exact here: padded rows/cols contribute 0 to every
        # real rowsum and every real output entry; the pad is sliced off.
        adj = jnp.pad(adj, ((0, n_pad - n), (0, n_pad - n)))

    t = tile if tile is not None else _pick_tile(n_pad)
    assert n_pad % t == 0, (n_pad, t)

    if symmetric:
        rowacc, colacc = _sym_sums_pass(adj, t)                 # A read once
        total = (rowacc + colacc.T) * 0.5 + 1.0                 # O(N) XLA work
        r = lax.rsqrt(total)
        r_inv = jnp.where(jnp.isinf(r), 0.0, r)                 # (n_pad, 1) f32
    else:
        r_inv = _rowsum_rinv_pass(adj, t)                       # rsqrt fused in-kernel

    r_col = r_inv.reshape(1, n_pad)                             # O(N) bytes only

    if symmetric:
        out = _sym_scale_pass(adj, r_inv, r_col, t, estimated_adj.dtype)
    else:
        out = _scale_pass(adj, r_inv, r_col, t, estimated_adj.dtype)

    if n_pad != n:
        out = out[:n, :n]
    return out


# ---------------------------------------------------------------------------
# Pure-JAX reference (mirrors the PyTorch semantics).
# ---------------------------------------------------------------------------
def _normalize_ref(adj, symmetric=False):
    a = adj
    if symmetric:
        a = (a + a.T) / 2.0
    n = a.shape[0]
    mx = a + jnp.eye(n, dtype=a.dtype)
    rowsum = mx.sum(1)
    r_inv = jnp.power(rowsum, -0.5)
    r_inv = jnp.where(jnp.isinf(r_inv), 0.0, r_inv)
    r_mat_inv = jnp.diag(r_inv)
    return r_mat_inv @ mx @ r_mat_inv


if __name__ == "__main__":
    # (N, explicit tile): 256/default exercises single-tile grids; 200/128
    # exercises the zero-padding path + mirror steps; 384/default exercises a
    # 3x3 tile grid (multi-step accumulation, diag + off-diag + mirrors).
    configs = [(256, None), (200, 128), (384, None)]

    for n, tile in configs:
        key = jax.random.PRNGKey(0)
        probs = jax.random.uniform(key, (n, n), dtype=jnp.float32)
        adj = (probs < 0.1).astype(jnp.float32)
        adj = jnp.maximum(adj, adj.T)                       # symmetric graph
        adj = adj * (1.0 - jnp.eye(n, dtype=jnp.float32))   # zero diagonal

        estimated_adj = adj  # parameter, initialized from adj (as in __init__)

        # forward(): identity read of the parameter.
        fwd = jax.block_until_ready(estimate_adj_forward(estimated_adj))
        assert np.allclose(np.asarray(fwd), np.asarray(estimated_adj))

        # normalize(): both symmetric=False and symmetric=True paths.
        for symmetric in (False, True):
            out = jax.block_until_ready(
                estimate_adj_normalize(estimated_adj, symmetric=symmetric,
                                       tile=tile))
            ref = _normalize_ref(estimated_adj, symmetric=symmetric)
            assert np.allclose(np.asarray(out), np.asarray(ref),
                               atol=1e-5, rtol=1e-5), (n, symmetric)

    print("KERNEL_OK")
</pallas_src>

<mosaic_0001>
module attributes {stable_mosaic.version = 11 : i64} {
  func.func @_rowsum_rinv_kernel(%arg0: i32, %arg1: i32, %arg2: memref<256x256xf32, #tpu.memory_space<vmem>>, %arg3: memref<256x1xf32, #tpu.memory_space<vmem>>) attributes {dimension_semantics = [#tpu.dimension_semantics<parallel>, #tpu.dimension_semantics<arbitrary>], iteration_bounds = array<i64: 1, 1>, scalar_prefetch = 0 : i64, scratch_operands = 0 : i64, tpu.core_type = #tpu.core_type<tc>, window_params = [{transform_indices = @transform_0, window_bounds = array<i64: 256, 256>}, {transform_indices = @transform_1, window_bounds = array<i64: 256, 1>}]} {
    %c0_i32 = arith.constant 0 : i32
    %0 = arith.cmpi eq, %arg1, %c0_i32 : i32
    %1 = arith.extui %0 : i1 to i32
    %c0_i32_0 = arith.constant 0 : i32
    %2 = arith.cmpi ne, %1, %c0_i32_0 : i32
    scf.if %2 {
      %cst_8 = arith.constant 0.000000e+00 : f32
      %12 = vector.broadcast %cst_8 : f32 to vector<256x1xf32>
      %c0_9 = arith.constant 0 : index
      %c0_10 = arith.constant 0 : index
      %13 = vector.load %arg3[%c0_9, %c0_10] : memref<256x1xf32, #tpu.memory_space<vmem>>, vector<256x1xf32>
      tpu.vector_store %arg3[%c0_9, %c0_10], %12 {strides = array<i32>} : memref<256x1xf32, #tpu.memory_space<vmem>>, vector<256x1xf32>,
    } else {
    }
    %c0 = arith.constant 0 : index
    %c0_1 = arith.constant 0 : index
    %3 = vector.load %arg2[%c0, %c0_1] : memref<256x256xf32, #tpu.memory_space<vmem>>, vector<256x256xf32>
    %c0_2 = arith.constant 0 : index
    %c0_3 = arith.constant 0 : index
    %4 = vector.load %arg3[%c0_2, %c0_3] : memref<256x1xf32, #tpu.memory_space<vmem>>, vector<256x1xf32>
    %cst = arith.constant dense<0.000000e+00> : vector<256xf32>
    %5 = vector.multi_reduction <add>, %3, %cst [1] : vector<256x256xf32> to vector<256xf32>
    %6 = vector.shape_cast %5 : vector<256xf32> to vector<256x1xf32>
    %7 = arith.addf %4, %6 : vector<256x1xf32>
    %c0_4 = arith.constant 0 : index
    %c0_5 = arith.constant 0 : index
    %8 = vector.load %arg3[%c0_4, %c0_5] : memref<256x1xf32, #tpu.memory_space<vmem>>, vector<256x1xf32>
    tpu.vector_store %arg3[%c0_4, %c0_5], %7 {strides = array<i32>} : memref<256x1xf32, #tpu.memory_space<vmem>>, vector<256x1xf32>,
    %c0_i32_6 = arith.constant 0 : i32
    %9 = arith.cmpi eq, %arg1, %c0_i32_6 : i32
    %10 = arith.extui %9 : i1 to i32
    %c0_i32_7 = arith.constant 0 : i32
    %11 = arith.cmpi ne, %10, %c0_i32_7 : i32
    scf.if %11 {
      %c0_8 = arith.constant 0 : index
      %c0_9 = arith.constant 0 : index
      %12 = vector.load %arg3[%c0_8, %c0_9] : memref<256x1xf32, #tpu.memory_space<vmem>>, vector<256x1xf32>
      %cst_10 = arith.constant 1.000000e+00 : f32
      %13 = vector.broadcast %cst_10 : f32 to vector<256x1xf32>
      %14 = arith.addf %12, %13 : vector<256x1xf32>
      %15 = math.rsqrt %14 : vector<256x1xf32>
      %16 = math.absf %15 : vector<256x1xf32>
      %cst_11 = arith.constant 0x7F800000 : f32
      %17 = vector.broadcast %cst_11 : f32 to vector<256x1xf32>
      %18 = arith.cmpf oeq, %16, %17 : vector<256x1xf32>
      %cst_12 = arith.constant 0.000000e+00 : f32
      %19 = vector.broadcast %cst_12 : f32 to vector<256x1xf32>
      %20 = arith.select %18, %19, %15 : vector<256x1xi1>, vector<256x1xf32>
      %c0_13 = arith.constant 0 : index
      %c0_14 = arith.constant 0 : index
      %21 = vector.load %arg3[%c0_13, %c0_14] : memref<256x1xf32, #tpu.memory_space<vmem>>, vector<256x1xf32>
      tpu.vector_store %arg3[%c0_13, %c0_14], %20 {strides = array<i32>} : memref<256x1xf32, #tpu.memory_space<vmem>>, vector<256x1xf32>,
    } else {
    }
    return
  }
  func.func @transform_0(%arg0: i32, %arg1: i32) -> (i32, i32) {
    %c0_i32 = arith.constant 0 : i32
    return %arg0, %arg1 : i32, i32
  }
  func.func @transform_1(%arg0: i32, %arg1: i32) -> (i32, i32) {
    %c0_i32 = arith.constant 0 : i32
    %c0_i32_0 = arith.constant 0 : i32
    return %arg0, %c0_i32 : i32, i32
  }
}

</mosaic_0001>

<llo_original>
// kernel: tpu_custom_call.1
$region0: #{tpu_custom_call.1}
  #allocation0 [shape = 'u32[]', space=smem, size = 0x4, offset = 0x4, fixed_abs, tag = 'smem constant byte address 0x4 - core index']
  #allocation1 [shape = 'u32[144,128]{1,0:T(1,128)}', space=vmem, size = 0x12000, scoped, tag = 'internal scratch']
  %s0 = inlined_call_operand.hbm [shape: f32[256,256], index: 0, kind: input, shape index: {}]
  %s1 = inlined_call_operand.vmem [shape: f32[256,1], index: 1, kind: output, shape index: {}]
  %s2 = sld [smem:[#allocation0]]
  $region26: #{tpu_custom_call.1} parent=0
    _
  %s4 = ssub.s32 1, %s2
  %s5 = scalar_select 0, %s4, %s2
  $region1: #{tpu_custom_call.1} parent=0
    #allocation2 [shape = 'u8[262144]{0}', space=vmem, size = 0x40000, scoped, tag = 'input window, operand 0, single buffered']
    #allocation3 [shape = 's32[1]{0}', space=sflag, size = 0x4, scoped, tag = 'scoped memory for tpu_custom_call.1']
    %6 = vsyncpa [#allocation3], 0
    // Predicated region
    $region2: #{tpu_custom_call.1} parent=1 // pred_check
      _
    $region3: #{tpu_custom_call.1} parent=1 // pred_check_branch
      %8 = sbr.rel (0) target = $region5
    $region4: #{tpu_custom_call.1} parent=1 // pred_region
      %s10 = ssub.s32 8192, 8192
      %11 = vsyncadd [#allocation3], %s10
      %s12 = sshll.u32 [#allocation2], 4
      %s13 = int_to_ptr.vmem [resolvable:$true] %s12
      %18 = dma.hbm_to_vmem [thread:$0]  %s0, 8192, %s13, [#allocation3], 256, 256, 16
    $region5: #{tpu_custom_call.1} parent=1 // pred_fallthru
      _
    // Predicated region
    $region6: #{tpu_custom_call.1} parent=1 // pred_check
      _
    $region7: #{tpu_custom_call.1} parent=1 // pred_check_branch
      %20 = sbr.rel (0) target = $region9
    $region8: #{tpu_custom_call.1} parent=1 // pred_region
      %21 = dma.done [#allocation3], 8192
    $region9: #{tpu_custom_call.1} parent=1 // pred_fallthru
      _
    %p22 = scmp.eq.s32.totalorder 0, 0
    // Predicated region
    $region10: #{tpu_custom_call.1} parent=1 // pred_check
      %p23 = pneg %p22
    $region11: #{tpu_custom_call.1} parent=1 // pred_check_branch
      %25 = sbr.rel (%p23) target = $region13
    $region12: #{tpu_custom_call.1} parent=1 // pred_region
      %vm26 = vcmask 7168
      %27 = vst.msk [vmem:[%s1] sm:$0xff] %vm26, 0.0
      %28 = vst.msk [vmem:[%s1 + $0x8] sm:$0xff] %vm26, 0.0
      %29 = vst.msk [vmem:[%s1 + $0x10] sm:$0xff] %vm26, 0.0
      %30 = vst.msk [vmem:[%s1 + $0x18] sm:$0xff] %vm26, 0.0
      %31 = vst.msk [vmem:[%s1 + $0x20] sm:$0xff] %vm26, 0.0
      %32 = vst.msk [vmem:[%s1 + $0x28] sm:$0xff] %vm26, 0.0
      %33 = vst.msk [vmem:[%s1 + $0x30] sm:$0xff] %vm26, 0.0
      %34 = vst.msk [vmem:[%s1 + $0x38] sm:$0xff] %vm26, 0.0
      %35 = vst.msk [vmem:[%s1 + $0x40] sm:$0xff] %vm26, 0.0
      %36 = vst.msk [vmem:[%s1 + $0x48] sm:$0xff] %vm26, 0.0
      %37 = vst.msk [vmem:[%s1 + $0x50] sm:$0xff] %vm26, 0.0
      %38 = vst.msk [vmem:[%s1 + $0x58] sm:$0xff] %vm26, 0.0
      %39 = vst.msk [vmem:[%s1 + $0x60] sm:$0xff] %vm26, 0.0
      %40 = vst.msk [vmem:[%s1 + $0x68] sm:$0xff] %vm26, 0.0
      %41 = vst.msk [vmem:[%s1 + $0x70] sm:$0xff] %vm26, 0.0
      %42 = vst.msk [vmem:[%s1 + $0x78] sm:$0xff] %vm26, 0.0
      %43 = vst.msk [vmem:[%s1 + $0x80] sm:$0xff] %vm26, 0.0
      %44 = vst.msk [vmem:[%s1 + $0x88] sm:$0xff] %vm26, 0.0
      %45 = vst.msk [vmem:[%s1 + $0x90] sm:$0xff] %vm26, 0.0
      %46 = vst.msk [vmem:[%s1 + $0x98] sm:$0xff] %vm26, 0.0
      %47 = vst.msk [vmem:[%s1 + $0xa0] sm:$0xff] %vm26, 0.0
      %48 = vst.msk [vmem:[%s1 + $0xa8] sm:$0xff] %vm26, 0.0
      %49 = vst.msk [vmem:[%s1 + $0xb0] sm:$0xff] %vm26, 0.0
      %50 = vst.msk [vmem:[%s1 + $0xb8] sm:$0xff] %vm26, 0.0
      %51 = vst.msk [vmem:[%s1 + $0xc0] sm:$0xff] %vm26, 0.0
      %52 = vst.msk [vmem:[%s1 + $0xc8] sm:$0xff] %vm26, 0.0
      %53 = vst.msk [vmem:[%s1 + $0xd0] sm:$0xff] %vm26, 0.0
      %54 = vst.msk [vmem:[%s1 + $0xd8] sm:$0xff] %vm26, 0.0
      %55 = vst.msk [vmem:[%s1 + $0xe0] sm:$0xff] %vm26, 0.0
      %56 = vst.msk [vmem:[%s1 + $0xe8] sm:$0xff] %vm26, 0.0
      %57 = vst.msk [vmem:[%s1 + $0xf0] sm:$0xff] %vm26, 0.0
      %58 = vst.msk [vmem:[%s1 + $0xf8] sm:$0xff] %vm26, 0.0
    $region13: #{tpu_custom_call.1} parent=1 // pred_fallthru
      _
    %v59 = vld [vmem:[#allocation2] sm:$0xff]
    %v60 = vld [vmem:[#allocation2 + $0x8] sm:$0xff]
    %v61 = vld [vmem:[#allocation2 + $0x10] sm:$0xff]
    %v62 = vld [vmem:[#allocation2 + $0x18] sm:$0xff]
    %v63 = vld [vmem:[#allocation2 + $0x20] sm:$0xff]
    %v64 = vld [vmem:[#allocation2 + $0x28] sm:$0xff]
    %v65 = vld [vmem:[#allocation2 + $0x30] sm:$0xff]
    %v66 = vld [vmem:[#allocation2 + $0x38] sm:$0xff]
    %v67 = vld [vmem:[#allocation2 + $0x40] sm:$0xff]
    %v68 = vld [vmem:[#allocation2 + $0x48] sm:$0xff]
    %v69 = vld [vmem:[#allocation2 + $0x50] sm:$0xff]
    %v70 = vld [vmem:[#allocation2 + $0x58] sm:$0xff]
    %v71 = vld [vmem:[#allocation2 + $0x60] sm:$0xff]
    %v72 = vld [vmem:[#allocation2 + $0x68] sm:$0xff]
    %v73 = vld [vmem:[#allocation2 + $0x70] sm:$0xff]
    %v74 = vld [vmem:[#allocation2 + $0x78] sm:$0xff]
    %v75 = vld [vmem:[#allocation2 + $0x80] sm:$0xff]
    %v76 = vld [vmem:[#allocation2 + $0x88] sm:$0xff]
    %v77 = vld [vmem:[#allocation2 + $0x90] sm:$0xff]
    %v78 = vld [vmem:[#allocation2 + $0x98] sm:$0xff]
    %v79 = vld [vmem:[#allocation2 + $0xa0] sm:$0xff]
    %v80 = vld [vmem:[#allocation2 + $0xa8] sm:$0xff]
    %v81 = vld [vmem:[#allocation2 + $0xb0] sm:$0xff]
    %v82 = vld [vmem:[#allocation2 + $0xb8] sm:$0xff]
    %v83 = vld [vmem:[#allocation2 + $0xc0] sm:$0xff]
    %v84 = vld [vmem:[#allocation2 + $0xc8] sm:$0xff]
    %v85 = vld [vmem:[#allocation2 + $0xd0] sm:$0xff]
    %v86 = vld [vmem:[#allocation2 + $0xd8] sm:$0xff]
    %v87 = vld [vmem:[#allocation2 + $0xe0] sm:$0xff]
    %v88 = vld [vmem:[#allocation2 + $0xe8] sm:$0xff]
    %v89 = vld [vmem:[#allocation2 + $0xf0] sm:$0xff]
    %v90 = vld [vmem:[#allocation2 + $0xf8] sm:$0xff]
    %v91 = vld [vmem:[#allocation2 + $0x100] sm:$0xff]
    %v92 = vld [vmem:[#allocation2 + $0x108] sm:$0xff]
    %v93 = vld [vmem:[#allocation2 + $0x110] sm:$0xff]
    %v94 = vld [vmem:[#allocation2 + $0x118] sm:$0xff]
    %v95 = vld [vmem:[#allocation2 + $0x120] sm:$0xff]
    %v96 = vld [vmem:[#allocation2 + $0x128] sm:$0xff]
    %v97 = vld [vmem:[#allocation2 + $0x130] sm:$0xff]
    %v98 = vld [vmem:[#allocation2 + $0x138] sm:$0xff]
    %v99 = vld [vmem:[#allocation2 + $0x140] sm:$0xff]
    %v100 = vld [vmem:[#allocation2 + $0x148] sm:$0xff]
    %v101 = vld [vmem:[#allocation2 + $0x150] sm:$0xff]
    %v102 = vld [vmem:[#allocation2 + $0x158] sm:$0xff]
    %v103 = vld [vmem:[#allocation2 + $0x160] sm:$0xff]
    %v104 = vld [vmem:[#allocation2 + $0x168] sm:$0xff]
    %v105 = vld [vmem:[#allocation2 + $0x170] sm:$0xff]
    %v106 = vld [vmem:[#allocation2 + $0x178] sm:$0xff]
    %v107 = vld [vmem:[#allocation2 + $0x180] sm:$0xff]
    %v108 = vld [vmem:[#allocation2 + $0x188] sm:$0xff]
    %v109 = vld [vmem:[#allocation2 + $0x190] sm:$0xff]
    %v110 = vld [vmem:[#allocation2 + $0x198] sm:$0xff]
    %v111 = vld [vmem:[#allocation2 + $0x1a0] sm:$0xff]
    %v112 = vld [vmem:[#allocation2 + $0x1a8] sm:$0xff]
    %v113 = vld [vmem:[#allocation2 + $0x1b0] sm:$0xff]
    %v114 = vld [vmem:[#allocation2 + $0x1b8] sm:$0xff]
    %v115 = vld [vmem:[#allocation2 + $0x1c0] sm:$0xff]
    %v116 = vld [vmem:[#allocation2 + $0x1c8] sm:$0xff]
    %v117 = vld [vmem:[#allocation2 + $0x1d0] sm:$0xff]
    %v118 = vld [vmem:[#allocation2 + $0x1d8] sm:$0xff]
    %v119 = vld [vmem:[#allocation2 + $0x1e0] sm:$0xff]
    %v120 = vld [vmem:[#allocation2 + $0x1e8] sm:$0xff]
    %v121 = vld [vmem:[#allocation2 + $0x1f0] sm:$0xff]
    %v122 = vld [vmem:[#allocation2 + $0x1f8] sm:$0xff]
    %v123 = vld [vmem:[%s1] sm:$0xff]
    %v124 = vld [vmem:[%s1 + $0x8] sm:$0xff]
    %v125 = vld [vmem:[%s1 + $0x10] sm:$0xff]
    %v126 = vld [vmem:[%s1 + $0x18] sm:$0xff]
    %v127 = vld [vmem:[%s1 + $0x20] sm:$0xff]
    %v128 = vld [vmem:[%s1 + $0x28] sm:$0xff]
    %v129 = vld [vmem:[%s1 + $0x30] sm:$0xff]
    %v130 = vld [vmem:[%s1 + $0x38] sm:$0xff]
    %v131 = vld [vmem:[%s1 + $0x40] sm:$0xff]
    %v132 = vld [vmem:[%s1 + $0x48] sm:$0xff]
    %v133 = vld [vmem:[%s1 + $0x50] sm:$0xff]
    %v134 = vld [vmem:[%s1 + $0x58] sm:$0xff]
    %v135 = vld [vmem:[%s1 + $0x60] sm:$0xff]
    %v136 = vld [vmem:[%s1 + $0x68] sm:$0xff]
    %v137 = vld [vmem:[%s1 + $0x70] sm:$0xff]
    %v138 = vld [vmem:[%s1 + $0x78] sm:$0xff]
    %v139 = vld [vmem:[%s1 + $0x80] sm:$0xff]
    %v140 = vld [vmem:[%s1 + $0x88] sm:$0xff]
    %v141 = vld [vmem:[%s1 + $0x90] sm:$0xff]
    %v142 = vld [vmem:[%s1 + $0x98] sm:$0xff]
    %v143 = vld [vmem:[%s1 + $0xa0] sm:$0xff]
    %v144 = vld [vmem:[%s1 + $0xa8] sm:$0xff]
    %v145 = vld [vmem:[%s1 + $0xb0] sm:$0xff]
    %v146 = vld [vmem:[%s1 + $0xb8] sm:$0xff]
    %v147 = vld [vmem:[%s1 + $0xc0] sm:$0xff]
    %v148 = vld [vmem:[%s1 + $0xc8] sm:$0xff]
    %v149 = vld [vmem:[%s1 + $0xd0] sm:$0xff]
    %v150 = vld [vmem:[%s1 + $0xd8] sm:$0xff]
    %v151 = vld [vmem:[%s1 + $0xe0] sm:$0xff]
    %v152 = vld [vmem:[%s1 + $0xe8] sm:$0xff]
    %v153 = vld [vmem:[%s1 + $0xf0] sm:$0xff]
    %v154 = vld [vmem:[%s1 + $0xf8] sm:$0xff]
    %v155 = vadd.f32 %v59, %v60
    %156 = vadd.xlane.f32.xlu0 %v155
    %v157 = vpop.xlane.xlu0 %156
    %v158 = vadd.f32 %v61, %v62
    %159 = vadd.xlane.f32.xlu0 %v158
    %v160 = vpop.xlane.xlu0 %159
    %v161 = vadd.f32 %v63, %v64
    %162 = vadd.xlane.f32.xlu0 %v161
    %v163 = vpop.xlane.xlu0 %162
    %v164 = vadd.f32 %v65, %v66
    %165 = vadd.xlane.f32.xlu0 %v164
    %v166 = vpop.xlane.xlu0 %165
    %v167 = vadd.f32 %v67, %v68
    %168 = vadd.xlane.f32.xlu0 %v167
    %v169 = vpop.xlane.xlu0 %168
    %v170 = vadd.f32 %v69, %v70
    %171 = vadd.xlane.f32.xlu0 %v170
    %v172 = vpop.xlane.xlu0 %171
    %v173 = vadd.f32 %v71, %v72
    %174 = vadd.xlane.f32.xlu0 %v173
    %v175 = vpop.xlane.xlu0 %174
    %v176 = vadd.f32 %v73, %v74
    %177 = vadd.xlane.f32.xlu0 %v176
    %v178 = vpop.xlane.xlu0 %177
    %v179 = vadd.f32 %v75, %v76
    %180 = vadd.xlane.f32.xlu0 %v179
    %v181 = vpop.xlane.xlu0 %180
    %v182 = vadd.f32 %v77, %v78
    %183 = vadd.xlane.f32.xlu0 %v182
    %v184 = vpop.xlane.xlu0 %183
    %v185 = vadd.f32 %v79, %v80
    %186 = vadd.xlane.f32.xlu0 %v185
    %v187 = vpop.xlane.xlu0 %186
    %v188 = vadd.f32 %v81, %v82
    %189 = vadd.xlane.f32.xlu0 %v188
    %v190 = vpop.xlane.xlu0 %189
    %v191 = vadd.f32 %v83, %v84
    %192 = vadd.xlane.f32.xlu0 %v191
    %v193 = vpop.xlane.xlu0 %192
    %v194 = vadd.f32 %v85, %v86
    %195 = vadd.xlane.f32.xlu0 %v194
    %v196 = vpop.xlane.xlu0 %195
    %v197 = vadd.f32 %v87, %v88
    %198 = vadd.xlane.f32.xlu0 %v197
    %v199 = vpop.xlane.xlu0 %198
    %v200 = vadd.f32 %v89, %v90
    %201 = vadd.xlane.f32.xlu0 %v200
    %v202 = vpop.xlane.xlu0 %201
    %v203 = vadd.f32 %v91, %v92
    %204 = vadd.xlane.f32.xlu0 %v203
    %v205 = vpop.xlane.xlu0 %204
    %v206 = vadd.f32 %v93, %v94
    %207 = vadd.xlane.f32.xlu0 %v206
    %v208 = vpop.xlane.xlu0 %207
    %v209 = vadd.f32 %v95, %v96
    %210 = vadd.xlane.f32.xlu0 %v209
    %v211 = vpop.xlane.xlu0 %210
    %v212 = vadd.f32 %v97, %v98
    %213 = vadd.xlane.f32.xlu0 %v212
    %v214 = vpop.xlane.xlu0 %213
    %v215 = vadd.f32 %v99, %v100
    %216 = vadd.xlane.f32.xlu0 %v215
    %v217 = vpop.xlane.xlu0 %216
    %v218 = vadd.f32 %v101, %v102
    %219 = vadd.xlane.f32.xlu0 %v218
    %v220 = vpop.xlane.xlu0 %219
    %v221 = vadd.f32 %v103, %v104
    %222 = vadd.xlane.f32.xlu0 %v221
    %v223 = vpop.xlane.xlu0 %222
    %v224 = vadd.f32 %v105, %v106
    %225 = vadd.xlane.f32.xlu0 %v224
    %v226 = vpop.xlane.xlu0 %225
    %v227 = vadd.f32 %v107, %v108
    %228 = vadd.xlane.f32.xlu0 %v227
    %v229 = vpop.xlane.xlu0 %228
    %v230 = vadd.f32 %v109, %v110
    %231 = vadd.xlane.f32.xlu0 %v230
    %v232 = vpop.xlane.xlu0 %231
    %v233 = vadd.f32 %v111, %v112
    %234 = vadd.xlane.f32.xlu0 %v233
    %v235 = vpop.xlane.xlu0 %234
    %v236 = vadd.f32 %v113, %v114
    %237 = vadd.xlane.f32.xlu0 %v236
    %v238 = vpop.xlane.xlu0 %237
    %v239 = vadd.f32 %v115, %v116
    %240 = vadd.xlane.f32.xlu0 %v239
    %v241 = vpop.xlane.xlu0 %240
    %v242 = vadd.f32 %v117, %v118
    %243 = vadd.xlane.f32.xlu0 %v242
    %v244 = vpop.xlane.xlu0 %243
    %v245 = vadd.f32 %v119, %v120
    %246 = vadd.xlane.f32.xlu0 %v245
    %v247 = vpop.xlane.xlu0 %246
    %v248 = vadd.f32 %v121, %v122
    %249 = vadd.xlane.f32.xlu0 %v248
    %v250 = vpop.xlane.xlu0 %249
    %v251 = vadd.f32 %v123, %v157
    %v252 = vadd.f32 %v124, %v160
    %v253 = vadd.f32 %v125, %v163
    %v254 = vadd.f32 %v126, %v166
    %v255 = vadd.f32 %v127, %v169
    %v256 = vadd.f32 %v128, %v172
    %v257 = vadd.f32 %v129, %v175
    %v258 = vadd.f32 %v130, %v178
    %v259 = vadd.f32 %v131, %v181
    %v260 = vadd.f32 %v132, %v184
    %v261 = vadd.f32 %v133, %v187
    %v262 = vadd.f32 %v134, %v190
    %v263 = vadd.f32 %v135, %v193
    %v264 = vadd.f32 %v136, %v196
    %v265 = vadd.f32 %v137, %v199
    %v266 = vadd.f32 %v138, %v202
    %v267 = vadd.f32 %v139, %v205
    %v268 = vadd.f32 %v140, %v208
    %v269 = vadd.f32 %v141, %v211
    %v270 = vadd.f32 %v142, %v214
    %v271 = vadd.f32 %v143, %v217
    %v272 = vadd.f32 %v144, %v220
    %v273 = vadd.f32 %v145, %v223
    %v274 = vadd.f32 %v146, %v226
    %v275 = vadd.f32 %v147, %v229
    %v276 = vadd.f32 %v148, %v232
    %v277 = vadd.f32 %v149, %v235
    %v278 = vadd.f32 %v150, %v238
    %v279 = vadd.f32 %v151, %v241
    %v280 = vadd.f32 %v152, %v244
    %v281 = vadd.f32 %v153, %v247
    %v282 = vadd.f32 %v154, %v250
    %vm283 = vcmask 7168
    %284 = vst.msk [vmem:[%s1] sm:$0xff] %vm283, %v251
    %285 = vst.msk [vmem:[%s1 + $0x8] sm:$0xff] %vm283, %v252
    %286 = vst.msk [vmem:[%s1 + $0x10] sm:$0xff] %vm283, %v253
    %287 = vst.msk [vmem:[%s1 + $0x18] sm:$0xff] %vm283, %v254
    %288 = vst.msk [vmem:[%s1 + $0x20] sm:$0xff] %vm283, %v255
    %289 = vst.msk [vmem:[%s1 + $0x28] sm:$0xff] %vm283, %v256
    %290 = vst.msk [vmem:[%s1 + $0x30] sm:$0xff] %vm283, %v257
    %291 = vst.msk [vmem:[%s1 + $0x38] sm:$0xff] %vm283, %v258
    %292 = vst.msk [vmem:[%s1 + $0x40] sm:$0xff] %vm283, %v259
    %293 = vst.msk [vmem:[%s1 + $0x48] sm:$0xff] %vm283, %v260
    %294 = vst.msk [vmem:[%s1 + $0x50] sm:$0xff] %vm283, %v261
    %295 = vst.msk [vmem:[%s1 + $0x58] sm:$0xff] %vm283, %v262
    %296 = vst.msk [vmem:[%s1 + $0x60] sm:$0xff] %vm283, %v263
    %297 = vst.msk [vmem:[%s1 + $0x68] sm:$0xff] %vm283, %v264
    %298 = vst.msk [vmem:[%s1 + $0x70] sm:$0xff] %vm283, %v265
    %299 = vst.msk [vmem:[%s1 + $0x78] sm:$0xff] %vm283, %v266
    %300 = vst.msk [vmem:[%s1 + $0x80] sm:$0xff] %vm283, %v267
    %301 = vst.msk [vmem:[%s1 + $0x88] sm:$0xff] %vm283, %v268
    %302 = vst.msk [vmem:[%s1 + $0x90] sm:$0xff] %vm283, %v269
    %303 = vst.msk [vmem:[%s1 + $0x98] sm:$0xff] %vm283, %v270
    %304 = vst.msk [vmem:[%s1 + $0xa0] sm:$0xff] %vm283, %v271
    %305 = vst.msk [vmem:[%s1 + $0xa8] sm:$0xff] %vm283, %v272
    %306 = vst.msk [vmem:[%s1 + $0xb0] sm:$0xff] %vm283, %v273
    %307 = vst.msk [vmem:[%s1 + $0xb8] sm:$0xff] %vm283, %v274
    %308 = vst.msk [vmem:[%s1 + $0xc0] sm:$0xff] %vm283, %v275
    %309 = vst.msk [vmem:[%s1 + $0xc8] sm:$0xff] %vm283, %v276
    %310 = vst.msk [vmem:[%s1 + $0xd0] sm:$0xff] %vm283, %v277
    %311 = vst.msk [vmem:[%s1 + $0xd8] sm:$0xff] %vm283, %v278
    %312 = vst.msk [vmem:[%s1 + $0xe0] sm:$0xff] %vm283, %v279
    %313 = vst.msk [vmem:[%s1 + $0xe8] sm:$0xff] %vm283, %v280
    %314 = vst.msk [vmem:[%s1 + $0xf0] sm:$0xff] %vm283, %v281
    %315 = vst.msk [vmem:[%s1 + $0xf8] sm:$0xff] %vm283, %v282
    // Predicated region
    $region14: #{tpu_custom_call.1} parent=1 // pred_check
      %p316 = pneg %p22
    $region15: #{tpu_custom_call.1} parent=1 // pred_check_branch
      %318 = sbr.rel (%p316) target = $region17
    $region16: #{tpu_custom_call.1} parent=1 // pred_region
      %v319 = vld [vmem:[%s1] sm:$0xff]
      %v320 = vld [vmem:[%s1 + $0x8] sm:$0xff]
      %v321 = vld [vmem:[%s1 + $0x10] sm:$0xff]
      %v322 = vld [vmem:[%s1 + $0x18] sm:$0xff]
      %v323 = vld [vmem:[%s1 + $0x20] sm:$0xff]
      %v324 = vld [vmem:[%s1 + $0x28] sm:$0xff]
      %v325 = vld [vmem:[%s1 + $0x30] sm:$0xff]
      %v326 = vld [vmem:[%s1 + $0x38] sm:$0xff]
      %v327 = vld [vmem:[%s1 + $0x40] sm:$0xff]
      %v328 = vld [vmem:[%s1 + $0x48] sm:$0xff]
      %v329 = vld [vmem:[%s1 + $0x50] sm:$0xff]
      %v330 = vld [vmem:[%s1 + $0x58] sm:$0xff]
      %v331 = vld [vmem:[%s1 + $0x60] sm:$0xff]
      %v332 = vld [vmem:[%s1 + $0x68] sm:$0xff]
      %v333 = vld [vmem:[%s1 + $0x70] sm:$0xff]
      %v334 = vld [vmem:[%s1 + $0x78] sm:$0xff]
      %v335 = vld [vmem:[%s1 + $0x80] sm:$0xff]
      %v336 = vld [vmem:[%s1 + $0x88] sm:$0xff]
      %v337 = vld [vmem:[%s1 + $0x90] sm:$0xff]
      %v338 = vld [vmem:[%s1 + $0x98] sm:$0xff]
      %v339 = vld [vmem:[%s1 + $0xa0] sm:$0xff]
      %v340 = vld [vmem:[%s1 + $0xa8] sm:$0xff]
      %v341 = vld [vmem:[%s1 + $0xb0] sm:$0xff]
      %v342 = vld [vmem:[%s1 + $0xb8] sm:$0xff]
      %v343 = vld [vmem:[%s1 + $0xc0] sm:$0xff]
      %v344 = vld [vmem:[%s1 + $0xc8] sm:$0xff]
      %v345 = vld [vmem:[%s1 + $0xd0] sm:$0xff]
      %v346 = vld [vmem:[%s1 + $0xd8] sm:$0xff]
      %v347 = vld [vmem:[%s1 + $0xe0] sm:$0xff]
      %v348 = vld [vmem:[%s1 + $0xe8] sm:$0xff]
      %v349 = vld [vmem:[%s1 + $0xf0] sm:$0xff]
      %v350 = vld [vmem:[%s1 + $0xf8] sm:$0xff]
      %v351 = vadd.f32 %v319, 1.0
      %v352 = vadd.f32 %v320, 1.0
      %v353 = vadd.f32 %v321, 1.0
      %v354 = vadd.f32 %v322, 1.0
      %v355 = vadd.f32 %v323, 1.0
      %v356 = vadd.f32 %v324, 1.0
      %v357 = vadd.f32 %v325, 1.0
      %v358 = vadd.f32 %v326, 1.0
      %v359 = vadd.f32 %v327, 1.0
      %v360 = vadd.f32 %v328, 1.0
      %v361 = vadd.f32 %v329, 1.0
      %v362 = vadd.f32 %v330, 1.0
      %v363 = vadd.f32 %v331, 1.0
      %v364 = vadd.f32 %v332, 1.0
      %v365 = vadd.f32 %v333, 1.0
      %v366 = vadd.f32 %v334, 1.0
      %v367 = vadd.f32 %v335, 1.0
      %v368 = vadd.f32 %v336, 1.0
      %v369 = vadd.f32 %v337, 1.0
      %v370 = vadd.f32 %v338, 1.0
      %v371 = vadd.f32 %v339, 1.0
      %v372 = vadd.f32 %v340, 1.0
      %v373 = vadd.f32 %v341, 1.0
      %v374 = vadd.f32 %v342, 1.0
      %v375 = vadd.f32 %v343, 1.0
      %v376 = vadd.f32 %v344, 1.0
      %v377 = vadd.f32 %v345, 1.0
      %v378 = vadd.f32 %v346, 1.0
      %v379 = vadd.f32 %v347, 1.0
      %v380 = vadd.f32 %v348, 1.0
      %v381 = vadd.f32 %v349, 1.0
      %v382 = vadd.f32 %v350, 1.0
      %v383 = vrsqrt.pop %v351
      %v384 = vrsqrt.pop %v352
      %v385 = vrsqrt.pop %v353
      %v386 = vrsqrt.pop %v354
      %v387 = vrsqrt.pop %v355
      %v388 = vrsqrt.pop %v356
      %v389 = vrsqrt.pop %v357
      %v390 = vrsqrt.pop %v358
      %v391 = vrsqrt.pop %v359
      %v392 = vrsqrt.pop %v360
      %v393 = vrsqrt.pop %v361
      %v394 = vrsqrt.pop %v362
      %v395 = vrsqrt.pop %v363
      %v396 = vrsqrt.pop %v364
      %v397 = vrsqrt.pop %v365
      %v398 = vrsqrt.pop %v366
      %v399 = vrsqrt.pop %v367
      %v400 = vrsqrt.pop %v368
      %v401 = vrsqrt.pop %v369
      %v402 = vrsqrt.pop %v370
      %v403 = vrsqrt.pop %v371
      %v404 = vrsqrt.pop %v372
      %v405 = vrsqrt.pop %v373
      %v406 = vrsqrt.pop %v374
      %v407 = vrsqrt.pop %v375
      %v408 = vrsqrt.pop %v376
      %v409 = vrsqrt.pop %v377
      %v410 = vrsqrt.pop %v378
      %v411 = vrsqrt.pop %v379
      %v412 = vrsqrt.pop %v380
      %v413 = vrsqrt.pop %v381
      %v414 = vrsqrt.pop %v382
      %v415 = vand.u32 2147483647, %v383
      %v416 = vand.u32 2147483647, %v384
      %v417 = vand.u32 2147483647, %v385
      %v418 = vand.u32 2147483647, %v386
      %v419 = vand.u32 2147483647, %v387
      %v420 = vand.u32 2147483647, %v388
      %v421 = vand.u32 2147483647, %v389
      %v422 = vand.u32 2147483647, %v390
      %v423 = vand.u32 2147483647, %v391
      %v424 = vand.u32 2147483647, %v392
      %v425 = vand.u32 2147483647, %v393
      %v426 = vand.u32 2147483647, %v394
      %v427 = vand.u32 2147483647, %v395
      %v428 = vand.u32 2147483647, %v396
      %v429 = vand.u32 2147483647, %v397
      %v430 = vand.u32 2147483647, %v398
      %v431 = vand.u32 2147483647, %v399
      %v432 = vand.u32 2147483647, %v400
      %v433 = vand.u32 2147483647, %v401
      %v434 = vand.u32 2147483647, %v402
      %v435 = vand.u32 2147483647, %v403
      %v436 = vand.u32 2147483647, %v404
      %v437 = vand.u32 2147483647, %v405
      %v438 = vand.u32 2147483647, %v406
      %v439 = vand.u32 2147483647, %v407
      %v440 = vand.u32 2147483647, %v408
      %v441 = vand.u32 2147483647, %v409
      %v442 = vand.u32 2147483647, %v410
      %v443 = vand.u32 2147483647, %v411
      %v444 = vand.u32 2147483647, %v412
      %v445 = vand.u32 2147483647, %v413
      %v446 = vand.u32 2147483647, %v414
      %vm447 = vcmp.eq.f32.partialorder %v415, inf
      %vm448 = vcmp.eq.f32.partialorder %v416, inf
      %vm449 = vcmp.eq.f32.partialorder %v417, inf
      %vm450 = vcmp.eq.f32.partialorder %v418, inf
      %vm451 = vcmp.eq.f32.partialorder %v419, inf
      %vm452 = vcmp.eq.f32.partialorder %v420, inf
      %vm453 = vcmp.eq.f32.partialorder %v421, inf
      %vm454 = vcmp.eq.f32.partialorder %v422, inf
      %vm455 = vcmp.eq.f32.partialorder %v423, inf
      %vm456 = vcmp.eq.f32.partialorder %v424, inf
      %vm457 = vcmp.eq.f32.partialorder %v425, inf
      %vm458 = vcmp.eq.f32.partialorder %v426, inf
      %vm459 = vcmp.eq.f32.partialorder %v427, inf
      %vm460 = vcmp.eq.f32.partialorder %v428, inf
      %vm461 = vcmp.eq.f32.partialorder %v429, inf
      %vm462 = vcmp.eq.f32.partialorder %v430, inf
      %vm463 = vcmp.eq.f32.partialorder %v431, inf
      %vm464 = vcmp.eq.f32.partialorder %v432, inf
      %vm465 = vcmp.eq.f32.partialorder %v433, inf
      %vm466 = vcmp.eq.f32.partialorder %v434, inf
      %vm467 = vcmp.eq.f32.partialorder %v435, inf
      %vm468 = vcmp.eq.f32.partialorder %v436, inf
      %vm469 = vcmp.eq.f32.partialorder %v437, inf
      %vm470 = vcmp.eq.f32.partialorder %v438, inf
      %vm471 = vcmp.eq.f32.partialorder %v439, inf
      %vm472 = vcmp.eq.f32.partialorder %v440, inf
      %vm473 = vcmp.eq.f32.partialorder %v441, inf
      %vm474 = vcmp.eq.f32.partialorder %v442, inf
      %vm475 = vcmp.eq.f32.partialorder %v443, inf
      %vm476 = vcmp.eq.f32.partialorder %v444, inf
      %vm477 = vcmp.eq.f32.partialorder %v445, inf
      %vm478 = vcmp.eq.f32.partialorder %v446, inf
      %v479 = vsel %vm447, 0.0, %v383
      %v480 = vsel %vm448, 0.0, %v384
      %v481 = vsel %vm449, 0.0, %v385
      %v482 = vsel %vm450, 0.0, %v386
      %v483 = vsel %vm451, 0.0, %v387
      %v484 = vsel %vm452, 0.0, %v388
      %v485 = vsel %vm453, 0.0, %v389
      %v486 = vsel %vm454, 0.0, %v390
      %v487 = vsel %vm455, 0.0, %v391
      %v488 = vsel %vm456, 0.0, %v392
      %v489 = vsel %vm457, 0.0, %v393
      %v490 = vsel %vm458, 0.0, %v394
      %v491 = vsel %vm459, 0.0, %v395
      %v492 = vsel %vm460, 0.0, %v396
      %v493 = vsel %vm461, 0.0, %v397
      %v494 = vsel %vm462, 0.0, %v398
      %v495 = vsel %vm463, 0.0, %v399
      %v496 = vsel %vm464, 0.0, %v400
      %v497 = vsel %vm465, 0.0, %v401
      %v498 = vsel %vm466, 0.0, %v402
      %v499 = vsel %vm467, 0.0, %v403
      %v500 = vsel %vm468, 0.0, %v404
      %v501 = vsel %vm469, 0.0, %v405
      %v502 = vsel %vm470, 0.0, %v406
      %v503 = vsel %vm471, 0.0, %v407
      %v504 = vsel %vm472, 0.0, %v408
      %v505 = vsel %vm473, 0.0, %v409
      %v506 = vsel %vm474, 0.0, %v410
      %v507 = vsel %vm475, 0.0, %v411
      %v508 = vsel %vm476, 0.0, %v412
      %v509 = vsel %vm477, 0.0, %v413
      %v510 = vsel %vm478, 0.0, %v414
      %511 = vst.msk [vmem:[%s1] sm:$0xff] %vm283, %v479
      %512 = vst.msk [vmem:[%s1 + $0x8] sm:$0xff] %vm283, %v480
      %513 = vst.msk [vmem:[%s1 + $0x10] sm:$0xff] %vm283, %v481
      %514 = vst.msk [vmem:[%s1 + $0x18] sm:$0xff] %vm283, %v482
      %515 = vst.msk [vmem:[%s1 + $0x20] sm:$0xff] %vm283, %v483
      %516 = vst.msk [vmem:[%s1 + $0x28] sm:$0xff] %vm283, %v484
      %517 = vst.msk [vmem:[%s1 + $0x30] sm:$0xff] %vm283, %v485
      %518 = vst.msk [vmem:[%s1 + $0x38] sm:$0xff] %vm283, %v486
      %519 = vst.msk [vmem:[%s1 + $0x40] sm:$0xff] %vm283, %v487
      %520 = vst.msk [vmem:[%s1 + $0x48] sm:$0xff] %vm283, %v488
      %521 = vst.msk [vmem:[%s1 + $0x50] sm:$0xff] %vm283, %v489
      %522 = vst.msk [vmem:[%s1 + $0x58] sm:$0xff] %vm283, %v490
      %523 = vst.msk [vmem:[%s1 + $0x60] sm:$0xff] %vm283, %v491
      %524 = vst.msk [vmem:[%s1 + $0x68] sm:$0xff] %vm283, %v492
      %525 = vst.msk [vmem:[%s1 + $0x70] sm:$0xff] %vm283, %v493
      %526 = vst.msk [vmem:[%s1 + $0x78] sm:$0xff] %vm283, %v494
      %527 = vst.msk [vmem:[%s1 + $0x80] sm:$0xff] %vm283, %v495
      %528 = vst.msk [vmem:[%s1 + $0x88] sm:$0xff] %vm283, %v496
      %529 = vst.msk [vmem:[%s1 + $0x90] sm:$0xff] %vm283, %v497
      %530 = vst.msk [vmem:[%s1 + $0x98] sm:$0xff] %vm283, %v498
      %531 = vst.msk [vmem:[%s1 + $0xa0] sm:$0xff] %vm283, %v499
      %532 = vst.msk [vmem:[%s1 + $0xa8] sm:$0xff] %vm283, %v500
      %533 = vst.msk [vmem:[%s1 + $0xb0] sm:$0xff] %vm283, %v501
      %534 = vst.msk [vmem:[%s1 + $0xb8] sm:$0xff] %vm283, %v502
      %535 = vst.msk [vmem:[%s1 + $0xc0] sm:$0xff] %vm283, %v503
      %536 = vst.msk [vmem:[%s1 + $0xc8] sm:$0xff] %vm283, %v504
      %537 = vst.msk [vmem:[%s1 + $0xd0] sm:$0xff] %vm283, %v505
      %538 = vst.msk [vmem:[%s1 + $0xd8] sm:$0xff] %vm283, %v506
      %539 = vst.msk [vmem:[%s1 + $0xe0] sm:$0xff] %vm283, %v507
      %540 = vst.msk [vmem:[%s1 + $0xe8] sm:$0xff] %vm283, %v508
      %541 = vst.msk [vmem:[%s1 + $0xf0] sm:$0xff] %vm283, %v509
      %542 = vst.msk [vmem:[%s1 + $0xf8] sm:$0xff] %vm283, %v510
    $region17: #{tpu_custom_call.1} parent=1 // pred_fallthru
      _
    // Predicated region
    $region18: #{tpu_custom_call.1} parent=1 // pred_check
      _
    $region19: #{tpu_custom_call.1} parent=1 // pred_check_branch
      %544 = sbr.rel (0) target = $region21
    $region20: #{tpu_custom_call.1} parent=1 // pred_region
      _
    $region21: #{tpu_custom_call.1} parent=1 // pred_fallthru
      _
    // Predicated region
    $region22: #{tpu_custom_call.1} parent=1 // pred_check
      _
    $region23: #{tpu_custom_call.1} parent=1 // pred_check_branch
      %546 = sbr.rel (0) target = $region25
    $region24: #{tpu_custom_call.1} parent=1 // pred_region
      _
    $region25: #{tpu_custom_call.1} parent=1 // pred_fallthru
      _
    %547 = vsyncpa [#allocation3], 1

</llo_original>
